<compile_context>
chip_gen: v5e
topology: v5e:2x2
jax: 0.10.0
libtpu: 0.0.40
codegen_flags: <defaults>
</compile_context>

<pallas_src>
import functools

import jax
import jax.numpy as jnp
import numpy as np
from jax.experimental import pallas as pl
from jax.experimental.pallas import tpu as pltpu

LEAKY_SLOPE = 0.01
BN_EPS = 1e-5

# Keep double-buffered per-step tiles well under every generation's default
# scoped VMEM (16 MiB on v5e, 32 MiB on v6e/v7x).
_VMEM_TILE_BUDGET_BYTES = 24 * 1024 * 1024


def _leaky_relu(v):
    return jnp.where(v >= 0, v, LEAKY_SLOPE * v)


def _attention_kernel(
    g_ref, x_ref, y_ref, z_ref,
    wx_ref, wy_ref, wz_ref, bsum_ref,
    wpsi_ref, bpsi_ref,
    out_ref, psi_ref,
):
    # Blocks are (1, C, TS): channels on sublanes, spatial on lanes.
    g = g_ref[0]            # (C_g,  TS)
    x = x_ref[0]            # (F_x,  TS)
    y = y_ref[0]            # (F_y,  TS)
    z = z_ref[0]            # (F_z,  TS)

    # 1x1x1 convs (BN folded): W(C_out, C_in) @ X(C_in, TS).  The lane-dense
    # TS axis is the MXU N dimension; the three branch biases are pre-summed.
    s = (
        jnp.dot(wx_ref[...], x, preferred_element_type=jnp.float32)
        + jnp.dot(wy_ref[...], y, preferred_element_type=jnp.float32)
        + jnp.dot(wz_ref[...], z, preferred_element_type=jnp.float32)
        + bsum_ref[...]
    )                                                        # (F_int, TS)
    s = _leaky_relu(s)

    # psi conv has a single output channel: broadcast-multiply on the VPU and
    # reduce over the (small) sublane/channel axis -- avoids an M=1 MXU matmul.
    p = jnp.sum(s * wpsi_ref[...], axis=0, keepdims=True) + bpsi_ref[...]  # (1, TS)
    p = _leaky_relu(p)

    # Direct indexed stores (no [None] reshaped temporaries).
    psi_ref[0] = p.astype(psi_ref.dtype)                      # (1,   TS)
    out_ref[0] = (g * p).astype(out_ref.dtype)                # (C_g, TS)


def _fold_bn(conv_w, conv_b, gamma, beta, mean, var):
    """Fold inference-mode BatchNorm3d into a 1x1x1 conv.

    conv_w: (C_out, C_in) squeezed Conv3d weight.
    Returns W_eff (C_out, C_in), b_eff (C_out,) ready for  W_eff @ X + b_eff.
    """
    scale = gamma / jnp.sqrt(var + BN_EPS)                   # (C_out,)
    w_eff = conv_w * scale[:, None]                          # (C_out, C_in)
    b_eff = (conv_b - mean) * scale + beta                   # (C_out,)
    return w_eff.astype(jnp.float32), b_eff.astype(jnp.float32)


@functools.partial(jax.jit, static_argnames=("tile_s",))
def attention_block_forward(g, x, y, z, params, tile_s=16384):
    """Pallas implementation of Attention_block.forward.

    g, x, y, z: NCDHW arrays (f32 or bf16) sharing the same N, D, H, W.
    Returns (g * psi, psi) in NCDHW, matching the PyTorch module.
    """
    n, cg, d, h, w = g.shape
    s_sp = d * h * w
    f_x, f_y, f_z = x.shape[1], y.shape[1], z.shape[1]

    wx, bx = _fold_bn(params["wx"], params["bx_conv"],
                      params["gx"], params["betax"], params["mx"], params["vx"])
    wy, by = _fold_bn(params["wy"], params["by_conv"],
                      params["gy"], params["betay"], params["my"], params["vy"])
    wz, bz = _fold_bn(params["wz"], params["bz_conv"],
                      params["gz"], params["betaz"], params["mz"], params["vz"])
    wpsi, bpsi = _fold_bn(params["wpsi"], params["bpsi_conv"],
                          params["gpsi"], params["betapsi"], params["mpsi"], params["vpsi"])
    f_int = wx.shape[0]

    bsum = (bx + by + bz).reshape(f_int, 1)   # single fused bias for the 3 branches
    wpsi_col = wpsi.T                         # (F_int, 1): broadcast over lanes
    bpsi_m = bpsi.reshape(1, 1)

    out_dtype = g.dtype

    # Free reshapes: NCDHW is contiguous, so NCDHW -> (N, C, D*H*W) moves no data.
    g3 = g.reshape(n, cg, s_sp)
    x3 = x.reshape(n, f_x, s_sp)
    y3 = y.reshape(n, f_y, s_sp)
    z3 = z.reshape(n, f_z, s_sp)

    # --- Spatial tile size selection (spatial axis lives on lanes). ---------
    # Cap tile so that double-buffered tiled operands (4 inputs + 2 outputs)
    # stay under the VMEM budget regardless of channel counts, then take the
    # user/default tile_s.  Everything here is static at trace time.
    itemsize = jnp.dtype(out_dtype).itemsize
    bytes_per_spatial_elem = itemsize * (cg + f_x + f_y + f_z) + itemsize * (cg + 1)
    max_ts = _VMEM_TILE_BUDGET_BYTES // (2 * max(bytes_per_spatial_elem, 1))
    max_ts = max(128, (max_ts // 128) * 128)
    ts_req = min(int(tile_s), int(max_ts))

    if s_sp <= ts_req:
        ts = s_sp                     # single block, equal to the full array dim
    else:
        ts = ts_req
        assert ts % 128 == 0, "effective tile size must be a multiple of 128"
    num_tiles = pl.cdiv(s_sp, ts)

    # Spatial-tile axis leads so v7x megacore sharding splits it even at N=1.
    grid = (num_tiles, n)

    def tile_spec(c):
        return pl.BlockSpec((1, c, ts), lambda i, b: (b, 0, i))

    def full_spec(shape):
        return pl.BlockSpec(shape, lambda i, b: (0,) * len(shape))

    out3, psi3 = pl.pallas_call(
        _attention_kernel,
        out_shape=(
            jax.ShapeDtypeStruct((n, cg, s_sp), out_dtype),
            jax.ShapeDtypeStruct((n, 1, s_sp), out_dtype),
        ),
        grid_spec=pltpu.PrefetchScalarGridSpec(
            num_scalar_prefetch=0,
            grid=grid,
            in_specs=[
                tile_spec(cg), tile_spec(f_x), tile_spec(f_y), tile_spec(f_z),
                full_spec((f_int, f_x)), full_spec((f_int, f_y)),
                full_spec((f_int, f_z)), full_spec((f_int, 1)),
                full_spec((f_int, 1)), full_spec((1, 1)),
            ],
            out_specs=[tile_spec(cg), tile_spec(1)],
        ),
        compiler_params=pltpu.CompilerParams(
            dimension_semantics=("parallel", "parallel")),
    )(g3, x3, y3, z3, wx, wy, wz, bsum, wpsi_col, bpsi_m)

    return out3.reshape(n, cg, d, h, w), psi3.reshape(n, 1, d, h, w)


# ----------------------------------------------------------------------------
# Pure-JAX reference (independent (S, C) layout) + demo.
# ----------------------------------------------------------------------------

def _to_2d(t):
    n, c, d, h, w = t.shape
    return jnp.transpose(t, (0, 2, 3, 4, 1)).reshape(n * d * h * w, c)


def _from_2d(t2d, n, d, h, w):
    c = t2d.shape[1]
    return jnp.transpose(t2d.reshape(n, d, h, w, c), (0, 4, 1, 2, 3))


def _reference(g, x, y, z, params):
    def branch(t2, w, b, gm, bt, mn, vr):
        hh = t2 @ w.T + b
        return (hh - mn) / jnp.sqrt(vr + BN_EPS) * gm + bt

    n, cg, d, h, w = g.shape
    g2, x2, y2, z2 = _to_2d(g), _to_2d(x), _to_2d(y), _to_2d(z)
    x1 = branch(x2, params["wx"], params["bx_conv"], params["gx"], params["betax"], params["mx"], params["vx"])
    y1 = branch(y2, params["wy"], params["by_conv"], params["gy"], params["betay"], params["my"], params["vy"])
    z1 = branch(z2, params["wz"], params["bz_conv"], params["gz"], params["betaz"], params["mz"], params["vz"])
    s = _leaky_relu(x1 + y1 + z1)
    p = branch(s, params["wpsi"], params["bpsi_conv"], params["gpsi"], params["betapsi"], params["mpsi"], params["vpsi"])
    p = _leaky_relu(p)
    return _from_2d(g2 * p, n, d, h, w), _from_2d(p, n, d, h, w)


def _init_branch(key, c_in, c_out):
    k1, k2, k3, k4, k5, k6 = jax.random.split(key, 6)
    return {
        "w": jax.random.normal(k1, (c_out, c_in), jnp.float32) * 0.1,
        "b": jax.random.normal(k2, (c_out,), jnp.float32) * 0.1,
        "gamma": 1.0 + 0.1 * jax.random.normal(k3, (c_out,), jnp.float32),
        "beta": 0.1 * jax.random.normal(k4, (c_out,), jnp.float32),
        "mean": 0.1 * jax.random.normal(k5, (c_out,), jnp.float32),
        "var": 1.0 + 0.5 * jax.random.uniform(k6, (c_out,), jnp.float32),
    }


if __name__ == "__main__":
    # Small, module-consistent shapes.
    N, D, H, W = 2, 4, 8, 8
    F_x, F_y, F_z, F_int = 4, 8, 16, 8
    F_g = 4  # channels of g (only constrained by broadcasting against 1-channel psi)

    key = jax.random.PRNGKey(0)
    kg, kx, ky, kz, kbx, kby, kbz, kbp, k2 = jax.random.split(key, 9)

    bx_p = _init_branch(kbx, F_x, F_int)
    by_p = _init_branch(kby, F_y, F_int)
    bz_p = _init_branch(kbz, F_z, F_int)
    bp_p = _init_branch(kbp, F_int, 1)

    # NOTE: BatchNorm3d is applied in inference mode (running stats), folded
    # into the 1x1x1 convs. TODO(synk): training-mode batch statistics would
    # require a cross-tile reduction pass and are not implemented here.
    params = {
        "wx": bx_p["w"], "bx_conv": bx_p["b"], "gx": bx_p["gamma"], "betax": bx_p["beta"],
        "mx": bx_p["mean"], "vx": bx_p["var"],
        "wy": by_p["w"], "by_conv": by_p["b"], "gy": by_p["gamma"], "betay": by_p["beta"],
        "my": by_p["mean"], "vy": by_p["var"],
        "wz": bz_p["w"], "bz_conv": bz_p["b"], "gz": bz_p["gamma"], "betaz": bz_p["beta"],
        "mz": bz_p["mean"], "vz": bz_p["var"],
        "wpsi": bp_p["w"], "bpsi_conv": bp_p["b"], "gpsi": bp_p["gamma"], "betapsi": bp_p["beta"],
        "mpsi": bp_p["mean"], "vpsi": bp_p["var"],
    }

    # Check 1: default (large) tile -> single full block per batch element.
    g = jax.random.normal(kg, (N, F_g, D, H, W), jnp.float32)
    x = jax.random.normal(kx, (N, F_x, D, H, W), jnp.float32)
    y = jax.random.normal(ky, (N, F_y, D, H, W), jnp.float32)
    z = jax.random.normal(kz, (N, F_z, D, H, W), jnp.float32)

    out, psi = attention_block_forward(g, x, y, z, params)
    out = jax.block_until_ready(out)
    psi = jax.block_until_ready(psi)

    ref_out, ref_psi = _reference(g, x, y, z, params)
    np.testing.assert_allclose(np.asarray(out), np.asarray(ref_out), rtol=1e-5, atol=1e-5)
    np.testing.assert_allclose(np.asarray(psi), np.asarray(ref_psi), rtol=1e-5, atol=1e-5)
    assert out.shape == (N, F_g, D, H, W)
    assert psi.shape == (N, 1, D, H, W)

    # Check 2: multi-tile grid with a partial last block (S=320, tile_s=128).
    D2, H2, W2 = 4, 8, 10
    kg2, kx2, ky2, kz2 = jax.random.split(k2, 4)
    g2 = jax.random.normal(kg2, (N, F_g, D2, H2, W2), jnp.float32)
    x2 = jax.random.normal(kx2, (N, F_x, D2, H2, W2), jnp.float32)
    y2 = jax.random.normal(ky2, (N, F_y, D2, H2, W2), jnp.float32)
    z2 = jax.random.normal(kz2, (N, F_z, D2, H2, W2), jnp.float32)

    out2, psi2 = attention_block_forward(g2, x2, y2, z2, params, tile_s=128)
    out2 = jax.block_until_ready(out2)
    psi2 = jax.block_until_ready(psi2)

    ref_out2, ref_psi2 = _reference(g2, x2, y2, z2, params)
    np.testing.assert_allclose(np.asarray(out2), np.asarray(ref_out2), rtol=1e-5, atol=1e-5)
    np.testing.assert_allclose(np.asarray(psi2), np.asarray(ref_psi2), rtol=1e-5, atol=1e-5)

    print("KERNEL_OK")
</pallas_src>

<mosaic_0001>
module attributes {stable_mosaic.version = 11 : i64} {
  func.func @_attention_kernel(%arg0: i32, %arg1: i32, %arg2: memref<1x4x256xf32, #tpu.memory_space<vmem>>, %arg3: memref<1x4x256xf32, #tpu.memory_space<vmem>>, %arg4: memref<1x8x256xf32, #tpu.memory_space<vmem>>, %arg5: memref<1x16x256xf32, #tpu.memory_space<vmem>>, %arg6: memref<8x4xf32, #tpu.memory_space<vmem>>, %arg7: memref<8x8xf32, #tpu.memory_space<vmem>>, %arg8: memref<8x16xf32, #tpu.memory_space<vmem>>, %arg9: memref<8x1xf32, #tpu.memory_space<vmem>>, %arg10: memref<8x1xf32, #tpu.memory_space<vmem>>, %arg11: memref<1x1xf32, #tpu.memory_space<vmem>>, %arg12: memref<1x4x256xf32, #tpu.memory_space<vmem>>, %arg13: memref<1x1x256xf32, #tpu.memory_space<vmem>>) attributes {dimension_semantics = [#tpu.dimension_semantics<parallel>, #tpu.dimension_semantics<parallel>], iteration_bounds = array<i64: 1, 2>, scalar_prefetch = 0 : i64, scratch_operands = 0 : i64, tpu.core_type = #tpu.core_type<tc>, window_params = [{transform_indices = @transform_0, window_bounds = array<i64: 1, 4, 256>}, {transform_indices = @transform_1, window_bounds = array<i64: 1, 4, 256>}, {transform_indices = @transform_2, window_bounds = array<i64: 1, 8, 256>}, {transform_indices = @transform_3, window_bounds = array<i64: 1, 16, 256>}, {pipeline_mode = #tpu.pipeline_mode<synchronous>, transform_indices = @transform_4, window_bounds = array<i64: 8, 4>}, {pipeline_mode = #tpu.pipeline_mode<synchronous>, transform_indices = @transform_5, window_bounds = array<i64: 8, 8>}, {pipeline_mode = #tpu.pipeline_mode<synchronous>, transform_indices = @transform_6, window_bounds = array<i64: 8, 16>}, {pipeline_mode = #tpu.pipeline_mode<synchronous>, transform_indices = @transform_7, window_bounds = array<i64: 8, 1>}, {pipeline_mode = #tpu.pipeline_mode<synchronous>, transform_indices = @transform_8, window_bounds = array<i64: 8, 1>}, {pipeline_mode = #tpu.pipeline_mode<synchronous>, transform_indices = @transform_9, window_bounds = array<i64: 1, 1>}, {transform_indices = @transform_10, window_bounds = array<i64: 1, 4, 256>}, {transform_indices = @transform_11, window_bounds = array<i64: 1, 1, 256>}]} {
    %c0 = arith.constant 0 : index
    %c0_0 = arith.constant 0 : index
    %c0_1 = arith.constant 0 : index
    %0 = vector.load %arg2[%c0, %c0_0, %c0_1] : memref<1x4x256xf32, #tpu.memory_space<vmem>>, vector<1x4x256xf32>
    %1 = vector.shape_cast %0 : vector<1x4x256xf32> to vector<4x256xf32>
    %c0_2 = arith.constant 0 : index
    %c0_3 = arith.constant 0 : index
    %c0_4 = arith.constant 0 : index
    %2 = vector.load %arg3[%c0_2, %c0_3, %c0_4] : memref<1x4x256xf32, #tpu.memory_space<vmem>>, vector<1x4x256xf32>
    %3 = vector.shape_cast %2 : vector<1x4x256xf32> to vector<4x256xf32>
    %c0_5 = arith.constant 0 : index
    %c0_6 = arith.constant 0 : index
    %c0_7 = arith.constant 0 : index
    %4 = vector.load %arg4[%c0_5, %c0_6, %c0_7] : memref<1x8x256xf32, #tpu.memory_space<vmem>>, vector<1x8x256xf32>
    %5 = vector.shape_cast %4 : vector<1x8x256xf32> to vector<8x256xf32>
    %c0_8 = arith.constant 0 : index
    %c0_9 = arith.constant 0 : index
    %c0_10 = arith.constant 0 : index
    %6 = vector.load %arg5[%c0_8, %c0_9, %c0_10] : memref<1x16x256xf32, #tpu.memory_space<vmem>>, vector<1x16x256xf32>
    %7 = vector.shape_cast %6 : vector<1x16x256xf32> to vector<16x256xf32>
    %c0_11 = arith.constant 0 : index
    %c0_12 = arith.constant 0 : index
    %8 = vector.load %arg6[%c0_11, %c0_12] : memref<8x4xf32, #tpu.memory_space<vmem>>, vector<8x4xf32>
    %cst = arith.constant dense<0.000000e+00> : vector<8x256xf32>
    %9 = tpu.matmul %8, %3, %cst {dimension_numbers = #tpu.dot_dimension_numbers<[1], [0], [0], [1], [0, 0, 1, 1], [], []>} : vector<8x4xf32>, vector<4x256xf32>, vector<8x256xf32> -> vector<8x256xf32>
    %c0_13 = arith.constant 0 : index
    %c0_14 = arith.constant 0 : index
    %10 = vector.load %arg7[%c0_13, %c0_14] : memref<8x8xf32, #tpu.memory_space<vmem>>, vector<8x8xf32>
    %cst_15 = arith.constant dense<0.000000e+00> : vector<8x256xf32>
    %11 = tpu.matmul %10, %5, %cst_15 {dimension_numbers = #tpu.dot_dimension_numbers<[1], [0], [0], [1], [0, 0, 1, 1], [], []>} : vector<8x8xf32>, vector<8x256xf32>, vector<8x256xf32> -> vector<8x256xf32>
    %12 = arith.addf %9, %11 : vector<8x256xf32>
    %c0_16 = arith.constant 0 : index
    %c0_17 = arith.constant 0 : index
    %13 = vector.load %arg8[%c0_16, %c0_17] : memref<8x16xf32, #tpu.memory_space<vmem>>, vector<8x16xf32>
    %cst_18 = arith.constant dense<0.000000e+00> : vector<8x256xf32>
    %14 = tpu.matmul %13, %7, %cst_18 {dimension_numbers = #tpu.dot_dimension_numbers<[1], [0], [0], [1], [0, 0, 1, 1], [], []>} : vector<8x16xf32>, vector<16x256xf32>, vector<8x256xf32> -> vector<8x256xf32>
    %15 = arith.addf %12, %14 : vector<8x256xf32>
    %c0_19 = arith.constant 0 : index
    %c0_20 = arith.constant 0 : index
    %16 = vector.load %arg9[%c0_19, %c0_20] : memref<8x1xf32, #tpu.memory_space<vmem>>, vector<8x1xf32>
    %17 = vector.broadcast %16 : vector<8x1xf32> to vector<8x256xf32>
    %18 = arith.addf %15, %17 : vector<8x256xf32>
    %cst_21 = arith.constant 0.000000e+00 : f32
    %19 = vector.broadcast %cst_21 : f32 to vector<8x256xf32>
    %20 = arith.cmpf oge, %18, %19 : vector<8x256xf32>
    %cst_22 = arith.constant 0.00999999977 : f32
    %21 = vector.broadcast %cst_22 : f32 to vector<8x256xf32>
    %22 = arith.mulf %21, %18 : vector<8x256xf32>
    %23 = arith.select %20, %18, %22 : vector<8x256xi1>, vector<8x256xf32>
    %c0_23 = arith.constant 0 : index
    %c0_24 = arith.constant 0 : index
    %24 = vector.load %arg10[%c0_23, %c0_24] : memref<8x1xf32, #tpu.memory_space<vmem>>, vector<8x1xf32>
    %25 = vector.broadcast %24 : vector<8x1xf32> to vector<8x256xf32>
    %26 = arith.mulf %23, %25 : vector<8x256xf32>
    %cst_25 = arith.constant dense<0.000000e+00> : vector<256xf32>
    %27 = vector.multi_reduction <add>, %26, %cst_25 [0] : vector<8x256xf32> to vector<256xf32>
    %28 = vector.shape_cast %27 : vector<256xf32> to vector<1x256xf32>
    %c0_26 = arith.constant 0 : index
    %c0_27 = arith.constant 0 : index
    %29 = vector.load %arg11[%c0_26, %c0_27] : memref<1x1xf32, #tpu.memory_space<vmem>>, vector<1x1xf32>
    %30 = vector.broadcast %29 : vector<1x1xf32> to vector<1x256xf32>
    %31 = arith.addf %28, %30 : vector<1x256xf32>
    %cst_28 = arith.constant 0.000000e+00 : f32
    %32 = vector.broadcast %cst_28 : f32 to vector<1x256xf32>
    %33 = arith.cmpf oge, %31, %32 : vector<1x256xf32>
    %cst_29 = arith.constant 0.00999999977 : f32
    %34 = vector.broadcast %cst_29 : f32 to vector<1x256xf32>
    %35 = arith.mulf %34, %31 : vector<1x256xf32>
    %36 = arith.select %33, %31, %35 : vector<1x256xi1>, vector<1x256xf32>
    %c0_30 = arith.constant 0 : index
    %c0_31 = arith.constant 0 : index
    %c0_32 = arith.constant 0 : index
    %37 = vector.load %arg13[%c0_30, %c0_31, %c0_32] : memref<1x1x256xf32, #tpu.memory_space<vmem>>, vector<1x1x256xf32>
    %38 = vector.shape_cast %37 : vector<1x1x256xf32> to vector<1x256xf32>
    %39 = vector.shape_cast %36 : vector<1x256xf32> to vector<1x1x256xf32>
    tpu.vector_store %arg13[%c0_30, %c0_31, %c0_32], %39 {strides = array<i32>} : memref<1x1x256xf32, #tpu.memory_space<vmem>>, vector<1x1x256xf32>,
    %40 = vector.broadcast %36 : vector<1x256xf32> to vector<4x256xf32>
    %41 = arith.mulf %1, %40 : vector<4x256xf32>
    %c0_33 = arith.constant 0 : index
    %c0_34 = arith.constant 0 : index
    %c0_35 = arith.constant 0 : index
    %42 = vector.load %arg12[%c0_33, %c0_34, %c0_35] : memref<1x4x256xf32, #tpu.memory_space<vmem>>, vector<1x4x256xf32>
    %43 = vector.shape_cast %42 : vector<1x4x256xf32> to vector<4x256xf32>
    %44 = vector.shape_cast %41 : vector<4x256xf32> to vector<1x4x256xf32>
    tpu.vector_store %arg12[%c0_33, %c0_34, %c0_35], %44 {strides = array<i32>} : memref<1x4x256xf32, #tpu.memory_space<vmem>>, vector<1x4x256xf32>,
    return
  }
  func.func @transform_0(%arg0: i32, %arg1: i32) -> (i32, i32, i32) {
    %c0_i32 = arith.constant 0 : i32
    %c0_i32_0 = arith.constant 0 : i32
    return %arg1, %c0_i32, %arg0 : i32, i32, i32
  }
  func.func @transform_1(%arg0: i32, %arg1: i32) -> (i32, i32, i32) {
    %c0_i32 = arith.constant 0 : i32
    %c0_i32_0 = arith.constant 0 : i32
    return %arg1, %c0_i32, %arg0 : i32, i32, i32
  }
  func.func @transform_2(%arg0: i32, %arg1: i32) -> (i32, i32, i32) {
    %c0_i32 = arith.constant 0 : i32
    %c0_i32_0 = arith.constant 0 : i32
    return %arg1, %c0_i32, %arg0 : i32, i32, i32
  }
  func.func @transform_3(%arg0: i32, %arg1: i32) -> (i32, i32, i32) {
    %c0_i32 = arith.constant 0 : i32
    %c0_i32_0 = arith.constant 0 : i32
    return %arg1, %c0_i32, %arg0 : i32, i32, i32
  }
  func.func @transform_4(%arg0: i32, %arg1: i32) -> (i32, i32) {
    %c0_i32 = arith.constant 0 : i32
    %c0_i32_0 = arith.constant 0 : i32
    %c0_i32_1 = arith.constant 0 : i32
    return %c0_i32, %c0_i32_0 : i32, i32
  }
  func.func @transform_5(%arg0: i32, %arg1: i32) -> (i32, i32) {
    %c0_i32 = arith.constant 0 : i32
    %c0_i32_0 = arith.constant 0 : i32
    %c0_i32_1 = arith.constant 0 : i32
    return %c0_i32, %c0_i32_0 : i32, i32
  }
  func.func @transform_6(%arg0: i32, %arg1: i32) -> (i32, i32) {
    %c0_i32 = arith.constant 0 : i32
    %c0_i32_0 = arith.constant 0 : i32
    %c0_i32_1 = arith.constant 0 : i32
    return %c0_i32, %c0_i32_0 : i32, i32
  }
  func.func @transform_7(%arg0: i32, %arg1: i32) -> (i32, i32) {
    %c0_i32 = arith.constant 0 : i32
    %c0_i32_0 = arith.constant 0 : i32
    %c0_i32_1 = arith.constant 0 : i32
    return %c0_i32, %c0_i32_0 : i32, i32
  }
  func.func @transform_8(%arg0: i32, %arg1: i32) -> (i32, i32) {
    %c0_i32 = arith.constant 0 : i32
    %c0_i32_0 = arith.constant 0 : i32
    %c0_i32_1 = arith.constant 0 : i32
    return %c0_i32, %c0_i32_0 : i32, i32
  }
  func.func @transform_9(%arg0: i32, %arg1: i32) -> (i32, i32) {
    %c0_i32 = arith.constant 0 : i32
    %c0_i32_0 = arith.constant 0 : i32
    %c0_i32_1 = arith.constant 0 : i32
    return %c0_i32, %c0_i32_0 : i32, i32
  }
  func.func @transform_10(%arg0: i32, %arg1: i32) -> (i32, i32, i32) {
    %c0_i32 = arith.constant 0 : i32
    %c0_i32_0 = arith.constant 0 : i32
    return %arg1, %c0_i32, %arg0 : i32, i32, i32
  }
  func.func @transform_11(%arg0: i32, %arg1: i32) -> (i32, i32, i32) {
    %c0_i32 = arith.constant 0 : i32
    %c0_i32_0 = arith.constant 0 : i32
    return %arg1, %c0_i32, %arg0 : i32, i32, i32
  }
}

</mosaic_0001>

<llo_original>
// kernel: attention_block_forward.1
$region0: #{attention_block_forward.1}
  #allocation0 [shape = 'u32[]', space=smem, size = 0x4, offset = 0x4, fixed_abs, tag = 'smem constant byte address 0x4 - core index']
  #allocation1 [shape = 'u32[72,128]{1,0:T(1,128)}', space=vmem, size = 0x9000, scoped, tag = 'internal scratch']
  #allocation2 [shape = 'f32[1,1]{1,0:T(1,128)S(1)}', space=vmem, size = 0x200, scoped, tag = 'scoped memory for attention_block_forward.1']
  %s0 = inlined_call_operand.vmem [shape: f32[2,4,256], index: 0, kind: input, shape index: {}]
  %s1 = inlined_call_operand.vmem [shape: f32[2,4,256], index: 1, kind: input, shape index: {}]
  %s2 = inlined_call_operand.vmem [shape: f32[2,8,256], index: 2, kind: input, shape index: {}]
  %s3 = inlined_call_operand.vmem [shape: f32[2,16,256], index: 3, kind: input, shape index: {}]
  %s4 = inlined_call_operand.vmem [shape: f32[8,4], index: 4, kind: input, shape index: {}]
  %s5 = inlined_call_operand.vmem [shape: f32[8,8], index: 5, kind: input, shape index: {}]
  %s6 = inlined_call_operand.vmem [shape: f32[8,16], index: 6, kind: input, shape index: {}]
  %s7 = inlined_call_operand.vmem [shape: f32[8,1], index: 7, kind: input, shape index: {}]
  %s8 = inlined_call_operand.vmem [shape: f32[8,1], index: 8, kind: input, shape index: {}]
  %s9 = inlined_call_operand.<no memory space> [shape: f32[1,1], index: 9, kind: input, shape index: {}]
  %s10 = inlined_call_operand.vmem [shape: f32[2,4,256], index: 10, kind: output, shape index: {0}]
  %s11 = inlined_call_operand.vmem [shape: f32[2,1,256], index: 11, kind: output, shape index: {1}]
  %12 = xla_tuple %s10, %s11
  %s13 = sld [smem:[#allocation0]]
  $region81: #{attention_block_forward.1} parent=0
    _
  %s15 = ssub.s32 1, %s13
  %s16 = scalar_select 0, %s15, %s13
  %v17 = vstv %s9
  %18 = vst [vmem:[#allocation2] sm:$0x1] %v17
  loop: start=0, step=1, limit=4
  $region2: #{attention_block_forward.1} parent=0 // loop_pre_header
    _
  $region3: #{attention_block_forward.1} parent=0 // loop_header
    %s20 = sphi 0, %s24
    %p21 = scmp.ge.s32.totalorder %s20, 4
    %s27 = sphi 0, %s39
    %s28 = sphi 0, %s35
    %s29 = sphi 0, %s27
    %s30 = sphi 0, %s28
    %s31 = sphi 0, %s29
    %s32 = sphi 0, %s30
    %s44 = sphi 0, %s46
    %s47 = sphi 0, %s44
    %s48 = sphi 0, %s47
    %s64 = sphi 0, %s48
    %s72 = sphi 0, %s74
    %s75 = sphi 0, %s72
    %s76 = sphi 0, %s75
    %s92 = sphi 0, %s76
    %s100 = sphi 0, %s102
    %s103 = sphi 0, %s100
    %s104 = sphi 0, %s103
    %s120 = sphi 0, %s104
    %s128 = sphi 0, %s130
    %s131 = sphi 0, %s128
    %s132 = sphi 0, %s131
    %s148 = sphi 0, %s132
    %s152 = sphi 0, %s152
    %s154 = sphi 0, %s152
    %s155 = sphi 0, %s154
    %s169 = sphi 0, %s155
    %s173 = sphi 0, %s173
    %s175 = sphi 0, %s173
    %s176 = sphi 0, %s175
    %s190 = sphi 0, %s176
    %s194 = sphi 0, %s194
    %s196 = sphi 0, %s194
    %s197 = sphi 0, %s196
    %s211 = sphi 0, %s197
    %s215 = sphi 0, %s215
    %s217 = sphi 0, %s215
    %s218 = sphi 0, %s217
    %s232 = sphi 0, %s218
    %s236 = sphi 0, %s236
    %s238 = sphi 0, %s236
    %s239 = sphi 0, %s238
    %s253 = sphi 0, %s239
    %s257 = sphi 0, %s257
    %s259 = sphi 0, %s257
    %s260 = sphi 0, %s259
    %s274 = sphi 0, %s260
    %s282 = sphi 0, %s284
    %s285 = sphi 0, %s282
    %s286 = sphi 0, %s285
    %s302 = sphi 0, %s286
    %s310 = sphi 0, %s312
    %s313 = sphi 0, %s310
    %s314 = sphi 0, %s313
    %s330 = sphi 0, %s314
  $region4: #{attention_block_forward.1} parent=0 // loop_header_branch
    %23 = sbr.rel (%p21) target = $region8
  $region5: #{attention_block_forward.1} parent=0 // loop_body
    %s25 = ssub.s32 %s20, 1
    %s26 = ssub.s32 %s20, 2
    %s33 = sadd.s32 1, %s28
    %p34 = scmp.ge.s32.totalorder %s33, 2
    %s35 = scalar_select %p34, 0, %s33
    %s36 = sadd.s32 1, %s27
    %s37 = scalar_select %p34, %s36, %s27
    %p38 = scmp.ge.s32.totalorder %s37, 1
    %s39 = scalar_select %p38, 0, %s37
    %s40 = ssub.s32 %s28, %s35
    %s41 = ssub.s32 %s27, %s39
    %s42 = sor.u32 %s40, %s41
    %p43 = scmp.eq.s32.totalorder %s42, 0
    %s45 = sadd.s32 %s44, 1
    %s46 = scalar_select %p43, %s44, %s45
    %p49 = pneg %p43
    %p50 = scmp.eq.s32.totalorder %s20, 1
    %p51 = por %p49, %p50
    %p52 = scmp.ne.s32.totalorder %s44, %s47
    %p53 = scmp.eq.s32.totalorder %s20, 0
    %p54 = por %p52, %p53
    %p55 = scmp.ne.s32.totalorder %s44, %s47
    %p56 = scmp.eq.s32.totalorder %s25, 1
    %p57 = por %p55, %p56
    %p58 = scmp.ne.s32.totalorder %s47, %s48
    %p59 = scmp.eq.s32.totalorder %s25, 0
    %p60 = por %p58, %p59
    %p61 = scmp.ne.s32.totalorder %s47, %s48
    %p62 = scmp.eq.s32.totalorder %s26, 1
    %p63 = por %p61, %p62
    %p65 = scmp.ne.s32.totalorder %s48, %s64
    %p66 = scmp.eq.s32.totalorder %s26, 0
    %p67 = por %p65, %p66
    %s68 = ssub.s32 %s28, %s35
    %s69 = ssub.s32 %s27, %s39
    %s70 = sor.u32 %s68, %s69
    %p71 = scmp.eq.s32.totalorder %s70, 0
    %s73 = sadd.s32 %s72, 1
    %s74 = scalar_select %p71, %s72, %s73
    %p77 = pneg %p71
    %p78 = scmp.eq.s32.totalorder %s20, 1
    %p79 = por %p77, %p78
    %p80 = scmp.ne.s32.totalorder %s72, %s75
    %p81 = scmp.eq.s32.totalorder %s20, 0
    %p82 = por %p80, %p81
    %p83 = scmp.ne.s32.totalorder %s72, %s75
    %p84 = scmp.eq.s32.totalorder %s25, 1
    %p85 = por %p83, %p84
    %p86 = scmp.ne.s32.totalorder %s75, %s76
    %p87 = scmp.eq.s32.totalorder %s25, 0
    %p88 = por %p86, %p87
    %p89 = scmp.ne.s32.totalorder %s75, %s76
    %p90 = scmp.eq.s32.totalorder %s26, 1
    %p91 = por %p89, %p90
    %p93 = scmp.ne.s32.totalorder %s76, %s92
    %p94 = scmp.eq.s32.totalorder %s26, 0
    %p95 = por %p93, %p94
    %s96 = ssub.s32 %s28, %s35
    %s97 = ssub.s32 %s27, %s39
    %s98 = sor.u32 %s96, %s97
    %p99 = scmp.eq.s32.totalorder %s98, 0
    %s101 = sadd.s32 %s100, 1
    %s102 = scalar_select %p99, %s100, %s101
    %p105 = pneg %p99
    %p106 = scmp.eq.s32.totalorder %s20, 1
    %p107 = por %p105, %p106
    %p108 = scmp.ne.s32.totalorder %s100, %s103
    %p109 = scmp.eq.s32.totalorder %s20, 0
    %p110 = por %p108, %p109
    %p111 = scmp.ne.s32.totalorder %s100, %s103
    %p112 = scmp.eq.s32.totalorder %s25, 1
    %p113 = por %p111, %p112
    %p114 = scmp.ne.s32.totalorder %s103, %s104
    %p115 = scmp.eq.s32.totalorder %s25, 0
    %p116 = por %p114, %p115
    %p117 = scmp.ne.s32.totalorder %s103, %s104
    %p118 = scmp.eq.s32.totalorder %s26, 1
    %p119 = por %p117, %p118
    %p121 = scmp.ne.s32.totalorder %s104, %s120
    %p122 = scmp.eq.s32.totalorder %s26, 0
    %p123 = por %p121, %p122
    %s124 = ssub.s32 %s28, %s35
    %s125 = ssub.s32 %s27, %s39
    %s126 = sor.u32 %s124, %s125
    %p127 = scmp.eq.s32.totalorder %s126, 0
    %s129 = sadd.s32 %s128, 1
    %s130 = scalar_select %p127, %s128, %s129
    %p133 = pneg %p127
    %p134 = scmp.eq.s32.totalorder %s20, 1
    %p135 = por %p133, %p134
    %p136 = scmp.ne.s32.totalorder %s128, %s131
    %p137 = scmp.eq.s32.totalorder %s20, 0
    %p138 = por %p136, %p137
    %p139 = scmp.ne.s32.totalorder %s128, %s131
    %p140 = scmp.eq.s32.totalorder %s25, 1
    %p141 = por %p139, %p140
    %p142 = scmp.ne.s32.totalorder %s131, %s132
    %p143 = scmp.eq.s32.totalorder %s25, 0
    %p144 = por %p142, %p143
    %p145 = scmp.ne.s32.totalorder %s131, %s132
    %p146 = scmp.eq.s32.totalorder %s26, 1
    %p147 = por %p145, %p146
    %p149 = scmp.ne.s32.totalorder %s132, %s148
    %p150 = scmp.eq.s32.totalorder %s26, 0
    %p151 = por %p149, %p150
    %s153 = sadd.s32 %s152, 1
    %p156 = scmp.eq.s32.totalorder %s20, 1
    %p157 = scmp.ne.s32.totalorder %s152, %s154
    %p158 = scmp.eq.s32.totalorder %s20, 0
    %p159 = por %p157, %p158
    %p160 = scmp.ne.s32.totalorder %s152, %s154
    %p161 = scmp.eq.s32.totalorder %s25, 1
    %p162 = por %p160, %p161
    %p163 = scmp.ne.s32.totalorder %s154, %s155
    %p164 = scmp.eq.s32.totalorder %s25, 0
    %p165 = por %p163, %p164
    %p166 = scmp.ne.s32.totalorder %s154, %s155
    %p167 = scmp.eq.s32.totalorder %s26, 1
    %p168 = por %p166, %p167
    %p170 = scmp.ne.s32.totalorder %s155, %s169
    %p171 = scmp.eq.s32.totalorder %s26, 0
    %p172 = por %p170, %p171
    %s174 = sadd.s32 %s173, 1
    %p177 = scmp.eq.s32.totalorder %s20, 1
    %p178 = scmp.ne.s32.totalorder %s173, %s175
    %p179 = scmp.eq.s32.totalorder %s20, 0
    %p180 = por %p178, %p179
    %p181 = scmp.ne.s32.totalorder %s173, %s175
    %p182 = scmp.eq.s32.totalorder %s25, 1
    %p183 = por %p181, %p182
    %p184 = scmp.ne.s32.totalorder %s175, %s176
    %p185 = scmp.eq.s32.totalorder %s25, 0
    %p186 = por %p184, %p185
    %p187 = scmp.ne.s32.totalorder %s175, %s176
    %p188 = scmp.eq.s32.totalorder %s26, 1
    %p189 = por %p187, %p188
    %p191 = scmp.ne.s32.totalorder %s176, %s190
    %p192 = scmp.eq.s32.totalorder %s26, 0
    %p193 = por %p191, %p192
    %s195 = sadd.s32 %s194, 1
    %p198 = scmp.eq.s32.totalorder %s20, 1
    %p199 = scmp.ne.s32.totalorder %s194, %s196
    %p200 = scmp.eq.s32.totalorder %s20, 0
    %p201 = por %p199, %p200
    %p202 = scmp.ne.s32.totalorder %s194, %s196
    %p203 = scmp.eq.s32.totalorder %s25, 1
    %p204 = por %p202, %p203
    %p205 = scmp.ne.s32.totalorder %s196, %s197
    %p206 = scmp.eq.s32.totalorder %s25, 0
    %p207 = por %p205, %p206
    %p208 = scmp.ne.s32.totalorder %s196, %s197
    %p209 = scmp.eq.s32.totalorder %s26, 1
    %p210 = por %p208, %p209
    %p212 = scmp.ne.s32.totalorder %s197, %s211
    %p213 = scmp.eq.s32.totalorder %s26, 0
    %p214 = por %p212, %p213
    %s216 = sadd.s32 %s215, 1
    %p219 = scmp.eq.s32.totalorder %s20, 1
    %p220 = scmp.ne.s32.totalorder %s215, %s217
    %p221 = scmp.eq.s32.totalorder %s20, 0
    %p222 = por %p220, %p221
    %p223 = scmp.ne.s32.totalorder %s215, %s217
    %p224 = scmp.eq.s32.totalorder %s25, 1
    %p225 = por %p223, %p224
    %p226 = scmp.ne.s32.totalorder %s217, %s218
    %p227 = scmp.eq.s32.totalorder %s25, 0
    %p228 = por %p226, %p227
    %p229 = scmp.ne.s32.totalorder %s217, %s218
    %p230 = scmp.eq.s32.totalorder %s26, 1
    %p231 = por %p229, %p230
    %p233 = scmp.ne.s32.totalorder %s218, %s232
    %p234 = scmp.eq.s32.totalorder %s26, 0
    %p235 = por %p233, %p234
    %s237 = sadd.s32 %s236, 1
    %p240 = scmp.eq.s32.totalorder %s20, 1
    %p241 = scmp.ne.s32.totalorder %s236, %s238
    %p242 = scmp.eq.s32.totalorder %s20, 0
    %p243 = por %p241, %p242
    %p244 = scmp.ne.s32.totalorder %s236, %s238
    %p245 = scmp.eq.s32.totalorder %s25, 1
    %p246 = por %p244, %p245
    %p247 = scmp.ne.s32.totalorder %s238, %s239
    %p248 = scmp.eq.s32.totalorder %s25, 0
    %p249 = por %p247, %p248
    %p250 = scmp.ne.s32.totalorder %s238, %s239
    %p251 = scmp.eq.s32.totalorder %s26, 1
    %p252 = por %p250, %p251
    %p254 = scmp.ne.s32.totalorder %s239, %s253
    %p255 = scmp.eq.s32.totalorder %s26, 0
    %p256 = por %p254, %p255
    %s258 = sadd.s32 %s257, 1
    %p261 = scmp.eq.s32.totalorder %s20, 1
    %p262 = scmp.ne.s32.totalorder %s257, %s259
    %p263 = scmp.eq.s32.totalorder %s20, 0
    %p264 = por %p262, %p263
    %p265 = scmp.ne.s32.totalorder %s257, %s259
    %p266 = scmp.eq.s32.totalorder %s25, 1
    %p267 = por %p265, %p266
    %p268 = scmp.ne.s32.totalorder %s259, %s260
    %p269 = scmp.eq.s32.totalorder %s25, 0
    %p270 = por %p268, %p269
    %p271 = scmp.ne.s32.totalorder %s259, %s260
    %p272 = scmp.eq.s32.totalorder %s26, 1
    %p273 = por %p271, %p272
    %p275 = scmp.ne.s32.totalorder %s260, %s274
    %p276 = scmp.eq.s32.totalorder %s26, 0
    %p277 = por %p275, %p276
    %s278 = ssub.s32 %s28, %s35
    %s279 = ssub.s32 %s27, %s39
    %s280 = sor.u32 %s278, %s279
    %p281 = scmp.eq.s32.totalorder %s280, 0
    %s283 = sadd.s32 %s282, 1
    %s284 = scalar_select %p281, %s282, %s283
    %p287 = pneg %p281
    %p288 = scmp.eq.s32.totalorder %s20, 1
    %p289 = por %p287, %p288
    %p290 = scmp.ne.s32.totalorder %s282, %s285
    %p291 = scmp.eq.s32.totalorder %s20, 0
    %p292 = por %p290, %p291
    %p293 = scmp.ne.s32.totalorder %s282, %s285
    %p294 = scmp.eq.s32.totalorder %s25, 1
    %p295 = por %p293, %p294
    %p296 = scmp.ne.s32.totalorder %s285, %s286
    %p297 = scmp.eq.s32.totalorder %s25, 0
    %p298 = por %p296, %p297
    %p299 = scmp.ne.s32.totalorder %s285, %s286
    %p300 = scmp.eq.s32.totalorder %s26, 1
    %p301 = por %p299, %p300
    %p303 = scmp.ne.s32.totalorder %s286, %s302
    %p304 = scmp.eq.s32.totalorder %s26, 0
    %p305 = por %p303, %p304
    %s306 = ssub.s32 %s28, %s35
    %s307 = ssub.s32 %s27, %s39
    %s308 = sor.u32 %s306, %s307
    %p309 = scmp.eq.s32.totalorder %s308, 0
    %s311 = sadd.s32 %s310, 1
    %s312 = scalar_select %p309, %s310, %s311
    %p315 = pneg %p309
    %p316 = scmp.eq.s32.totalorder %s20, 1
    %p317 = por %p315, %p316
    %p318 = scmp.ne.s32.totalorder %s310, %s313
    %p319 = scmp.eq.s32.totalorder %s20, 0
    %p320 = por %p318, %p319
    %p321 = scmp.ne.s32.totalorder %s310, %s313
    %p322 = scmp.eq.s32.totalorder %s25, 1
    %p323 = por %p321, %p322
    %p324 = scmp.ne.s32.totalorder %s313, %s314
    %p325 = scmp.eq.s32.totalorder %s25, 0
    %p326 = por %p324, %p325
    %p327 = scmp.ne.s32.totalorder %s313, %s314
    %p328 = scmp.eq.s32.totalorder %s26, 1
    %p329 = por %p327, %p328
    %p331 = scmp.ne.s32.totalorder %s314, %s330
    %p332 = scmp.eq.s32.totalorder %s26, 0
    %p333 = por %p331, %p332
    %p334 = scmp.le.s32.totalorder 1, %s20
    %p335 = scmp.lt.s32.totalorder %s20, 3
    %p336 = pnand %p334, %p335
    %p337 = pneg %p336
    // Predicated region
    $region9: #{attention_block_forward.1} parent=5 // pred_check
      _
    $region10: #{attention_block_forward.1} parent=5 // pred_check_branch
      %339 = sbr.rel (%p336) target = $region12
    $region11: #{attention_block_forward.1} parent=5 // pred_region
      %s340 = ssub.s32 %s20, 1
      // Predicated region
      $region13: #{attention_block_forward.1} parent=11 // pred_check
        %p341 = pneg %p165
      $region14: #{attention_block_forward.1} parent=11 // pred_check_branch
        %343 = sbr.rel (%p341) target = $region16
      $region15: #{attention_block_forward.1} parent=11 // pred_region
        _
      $region16: #{attention_block_forward.1} parent=11 // pred_fallthru
        _
      // Predicated region
      $region17: #{attention_block_forward.1} parent=11 // pred_check
        %p344 = pneg %p186
      $region18: #{attention_block_forward.1} parent=11 // pred_check_branch
        %346 = sbr.rel (%p344) target = $region20
      $region19: #{attention_block_forward.1} parent=11 // pred_region
        _
      $region20: #{attention_block_forward.1} parent=11 // pred_fallthru
        _
      // Predicated region
      $region21: #{attention_block_forward.1} parent=11 // pred_check
        %p347 = pneg %p207
      $region22: #{attention_block_forward.1} parent=11 // pred_check_branch
        %349 = sbr.rel (%p347) target = $region24
      $region23: #{attention_block_forward.1} parent=11 // pred_region
        _
      $region24: #{attention_block_forward.1} parent=11 // pred_fallthru
        _
      // Predicated region
      $region25: #{attention_block_forward.1} parent=11 // pred_check
        %p350 = pneg %p228
      $region26: #{attention_block_forward.1} parent=11 // pred_check_branch
        %352 = sbr.rel (%p350) target = $region28
      $region27: #{attention_block_forward.1} parent=11 // pred_region
        _
      $region28: #{attention_block_forward.1} parent=11 // pred_fallthru
        _
      // Predicated region
      $region29: #{attention_block_forward.1} parent=11 // pred_check
        %p353 = pneg %p249
      $region30: #{attention_block_forward.1} parent=11 // pred_check_branch
        %355 = sbr.rel (%p353) target = $region32
      $region31: #{attention_block_forward.1} parent=11 // pred_region
        _
      $region32: #{attention_block_forward.1} parent=11 // pred_fallthru
        _
      // Predicated region
      $region33: #{attention_block_forward.1} parent=11 // pred_check
        %p356 = pneg %p270
      $region34: #{attention_block_forward.1} parent=11 // pred_check_branch
        %358 = sbr.rel (%p356) target = $region36
      $region35: #{attention_block_forward.1} parent=11 // pred_region
        _
      $region36: #{attention_block_forward.1} parent=11 // pred_fallthru
        _
    $region12: #{attention_block_forward.1} parent=5 // pred_fallthru
      _
    %p359 = scmp.lt.s32.totalorder %s20, 2
    // Predicated region
    $region37: #{attention_block_forward.1} parent=5 // pred_check
      %p360 = pneg %p359
    $region38: #{attention_block_forward.1} parent=5 // pred_check_branch
      %362 = sbr.rel (%p360) target = $region40
    $region39: #{attention_block_forward.1} parent=5 // pred_region
      // Predicated region
      $region41: #{attention_block_forward.1} parent=39 // pred_check
        %p363 = pneg %p54
      $region42: #{attention_block_forward.1} parent=39 // pred_check_branch
        %365 = sbr.rel (%p363) target = $region44
      $region43: #{attention_block_forward.1} parent=39 // pred_region
        %s366 = smul.u32 2, %s27
        %p367 = scmp.lt.s32.totalorder %s28, 1
        %s368 = scalar_select %p367, %s28, 1
        %p369 = scmp.lt.s32.totalorder %s366, 1
        %s370 = scalar_select %p369, %s366, 1
        %s371 = smul.addr %s368, 2
        %s372 = sadd.s32 %s370, %s371
        %s373 = smul.addr %s372, 4
        %s374 = scalar_lea.vmem %s0, %s373
        %s375 = smul.u32 2, %s27
      $region44: #{attention_block_forward.1} parent=39 // pred_fallthru
        _
      // Predicated region
      $region45: #{attention_block_forward.1} parent=39 // pred_check
        %p376 = pneg %p82
      $region46: #{attention_block_forward.1} parent=39 // pred_check_branch
        %378 = sbr.rel (%p376) target = $region48
      $region47: #{attention_block_forward.1} parent=39 // pred_region
        %s379 = smul.u32 2, %s27
        %p380 = scmp.lt.s32.totalorder %s28, 1
        %s381 = scalar_select %p380, %s28, 1
        %p382 = scmp.lt.s32.totalorder %s379, 1
        %s383 = scalar_select %p382, %s379, 1
        %s384 = smul.addr %s381, 2
        %s385 = sadd.s32 %s383, %s384
        %s386 = smul.addr %s385, 4
        %s387 = scalar_lea.vmem %s1, %s386
        %s388 = smul.u32 2, %s27
      $region48: #{attention_block_forward.1} parent=39 // pred_fallthru
        _
      // Predicated region
      $region49: #{attention_block_forward.1} parent=39 // pred_check
        %p389 = pneg %p110
      $region50: #{attention_block_forward.1} parent=39 // pred_check_branch
        %391 = sbr.rel (%p389) target = $region52
      $region51: #{attention_block_forward.1} parent=39 // pred_region
        %s392 = smul.u32 2, %s27
        %p393 = scmp.lt.s32.totalorder %s28, 1
        %s394 = scalar_select %p393, %s28, 1
        %p395 = scmp.lt.s32.totalorder %s392, 1
        %s396 = scalar_select %p395, %s392, 1
        %s397 = smul.addr %s394, 2
        %s398 = sadd.s32 %s396, %s397
        %s399 = smul.addr %s398, 8
        %s400 = scalar_lea.vmem %s2, %s399
        %s401 = smul.u32 2, %s27
      $region52: #{attention_block_forward.1} parent=39 // pred_fallthru
        _
      // Predicated region
      $region53: #{attention_block_forward.1} parent=39 // pred_check
        %p402 = pneg %p138
      $region54: #{attention_block_forward.1} parent=39 // pred_check_branch
        %404 = sbr.rel (%p402) target = $region56
      $region55: #{attention_block_forward.1} parent=39 // pred_region
        %s405 = smul.u32 2, %s27
        %p406 = scmp.lt.s32.totalorder %s28, 1
        %s407 = scalar_select %p406, %s28, 1
        %p408 = scmp.lt.s32.totalorder %s405, 1
        %s409 = scalar_select %p408, %s405, 1
        %s410 = smul.addr %s407, 4
        %s411 = sadd.s32 %s409, %s410
        %s412 = smul.addr %s411, 8
        %s413 = scalar_lea.vmem %s3, %s412
        %s414 = smul.u32 2, %s27
      $region56: #{attention_block_forward.1} parent=39 // pred_fallthru
        _
    $region40: #{attention_block_forward.1} parent=5 // pred_fallthru
      _
    %p415 = scmp.le.s32.totalorder 1, %s20
    %p416 = scmp.lt.s32.totalorder %s20, 3
    %p417 = pnand %p415, %p416
    %p418 = pneg %p417
    // Predicated region
    $region57: #{attention_block_forward.1} parent=5 // pred_check
      _
    $region58: #{attention_block_forward.1} parent=5 // pred_check_branch
      %420 = sbr.rel (%p417) target = $region60
    $region59: #{attention_block_forward.1} parent=5 // pred_region
      %s421 = ssub.s32 %s20, 1
      %s422 = smul.u32 2, %s29
      %p423 = scmp.lt.s32.totalorder %s30, 1
      %s424 = scalar_select %p423, %s30, 1
      %p425 = scmp.lt.s32.totalorder %s422, 1
      %s426 = scalar_select %p425, %s422, 1
      %s427 = smul.addr %s424, 2
      %s428 = sadd.s32 %s426, %s427
      %s429 = smul.addr %s428, 4
      %s430 = scalar_lea.vmem %s0, %s429
      %p431 = pneg %p60
      %p432 = pneg %p57
      %s433 = smul.u32 2, %s29
      %p434 = scmp.lt.s32.totalorder %s30, 1
      %s435 = scalar_select %p434, %s30, 1
      %p436 = scmp.lt.s32.totalorder %s433, 1
      %s437 = scalar_select %p436, %s433, 1
      %s438 = smul.addr %s435, 2
      %s439 = sadd.s32 %s437, %s438
      %s440 = smul.addr %s439, 4
      %s441 = scalar_lea.vmem %s1, %s440
      %p442 = pneg %p88
      %p443 = pneg %p85
      %s444 = smul.u32 2, %s29
      %p445 = scmp.lt.s32.totalorder %s30, 1
      %s446 = scalar_select %p445, %s30, 1
      %p447 = scmp.lt.s32.totalorder %s444, 1
      %s448 = scalar_select %p447, %s444, 1
      %s449 = smul.addr %s446, 2
      %s450 = sadd.s32 %s448, %s449
      %s451 = smul.addr %s450, 8
      %s452 = scalar_lea.vmem %s2, %s451
      %p453 = pneg %p116
      %p454 = pneg %p113
      %s455 = smul.u32 2, %s29
      %p456 = scmp.lt.s32.totalorder %s30, 1
      %s457 = scalar_select %p456, %s30, 1
      %p458 = scmp.lt.s32.totalorder %s455, 1
      %s459 = scalar_select %p458, %s455, 1
      %s460 = smul.addr %s457, 4
      %s461 = sadd.s32 %s459, %s460
      %s462 = smul.addr %s461, 8
      %s463 = scalar_lea.vmem %s3, %s462
      %p464 = pneg %p144
      %p465 = pneg %p141
      %p466 = pneg %p165
      %p467 = pneg %p162
      %p468 = pneg %p186
      %p469 = pneg %p183
      %p470 = pneg %p207
      %p471 = pneg %p204
      %p472 = pneg %p228
      %p473 = pneg %p225
      %p474 = pneg %p249
      %p475 = pneg %p246
      %p476 = pneg %p270
      %p477 = pneg %p267
      %p478 = pneg %p298
      %p479 = pneg %p295
      %s480 = smul.u32 2, %s29
      %p481 = scmp.lt.s32.totalorder %s30, 1
      %s482 = scalar_select %p481, %s30, 1
      %p483 = scmp.lt.s32.totalorder %s480, 1
      %s484 = scalar_select %p483, %s480, 1
      %s485 = smul.addr %s482, 2
      %s486 = sadd.s32 %s484, %s485
      %s487 = smul.addr %s486, 4
      %s488 = scalar_lea.vmem %s10, %s487
      %p489 = pneg %p326
      %p490 = pneg %p323
      %s491 = smul.u32 2, %s29
      %p492 = scmp.lt.s32.totalorder %s30, 1
      %s493 = scalar_select %p492, %s30, 1
      %p494 = scmp.lt.s32.totalorder %s491, 1
      %s495 = scalar_select %p494, %s491, 1
      %s496 = smul.addr %s493, 2
      %s497 = sadd.s32 %s495, %s496
      %s498 = scalar_lea.vmem %s11, %s497
      %s499 = smul.u32 2, %s29
      %p500 = scmp.lt.s32.totalorder %s30, 1
      %s501 = scalar_select %p500, %s30, 1
      %p502 = scmp.lt.s32.totalorder %s499, 1
      %s503 = scalar_select %p502, %s499, 1
      %s504 = smul.addr %s501, 2
      %s505 = sadd.s32 %s503, %s504
      %s506 = smul.addr %s505, 4
      %s507 = scalar_lea.vmem %s0, %s506
      %s508 = smul.u32 2, %s29
      %s509 = smul.u32 2, %s29
      %p510 = scmp.lt.s32.totalorder %s30, 1
      %s511 = scalar_select %p510, %s30, 1
      %p512 = scmp.lt.s32.totalorder %s509, 1
      %s513 = scalar_select %p512, %s509, 1
      %s514 = smul.addr %s511, 2
      %s515 = sadd.s32 %s513, %s514
      %s516 = smul.addr %s515, 4
      %s517 = scalar_lea.vmem %s1, %s516
      %s518 = smul.u32 2, %s29
      %s519 = smul.u32 2, %s29
      %p520 = scmp.lt.s32.totalorder %s30, 1
      %s521 = scalar_select %p520, %s30, 1
      %p522 = scmp.lt.s32.totalorder %s519, 1
      %s523 = scalar_select %p522, %s519, 1
      %s524 = smul.addr %s521, 2
      %s525 = sadd.s32 %s523, %s524
      %s526 = smul.addr %s525, 8
      %s527 = scalar_lea.vmem %s2, %s526
      %s528 = smul.u32 2, %s29
      %s529 = smul.u32 2, %s29
      %p530 = scmp.lt.s32.totalorder %s30, 1
      %s531 = scalar_select %p530, %s30, 1
      %p532 = scmp.lt.s32.totalorder %s529, 1
      %s533 = scalar_select %p532, %s529, 1
      %s534 = smul.addr %s531, 4
      %s535 = sadd.s32 %s533, %s534
      %s536 = smul.addr %s535, 8
      %s537 = scalar_lea.vmem %s3, %s536
      %s538 = smul.u32 2, %s29
      %s539 = smul.u32 2, %s29
      %p540 = scmp.lt.s32.totalorder %s30, 1
      %s541 = scalar_select %p540, %s30, 1
      %p542 = scmp.lt.s32.totalorder %s539, 1
      %s543 = scalar_select %p542, %s539, 1
      %s544 = smul.addr %s541, 2
      %s545 = sadd.s32 %s543, %s544
      %s546 = smul.addr %s545, 4
      %s547 = scalar_lea.vmem %s10, %s546
      %s548 = smul.u32 2, %s29
      %s549 = smul.u32 2, %s29
      %p550 = scmp.lt.s32.totalorder %s30, 1
      %s551 = scalar_select %p550, %s30, 1
      %p552 = scmp.lt.s32.totalorder %s549, 1
      %s553 = scalar_select %p552, %s549, 1
      %s554 = smul.addr %s551, 2
      %s555 = sadd.s32 %s553, %s554
      %s556 = scalar_lea.vmem %s11, %s555
      %s557 = smul.u32 2, %s29
      %v558 = vld [vmem:[%s507] sm:$0xff]
      %v559 = vld [vmem:[%s517] sm:$0xff]
      %v560 = vld [vmem:[%s527] sm:$0xff]
      %v561 = vld [vmem:[%s527 + $0x8] sm:$0xff]
      %v562 = vld [vmem:[%s537] sm:$0xff]
      %v563 = vld [vmem:[%s537 + $0x8] sm:$0xff]
      %v564 = vld [vmem:[%s537 + $0x10] sm:$0xff]
      %v565 = vld [vmem:[%s537 + $0x18] sm:$0xff]
      %v566 = vld [vmem:[%s4] sm:$0xff]
      %v567 = vld [vmem:[%s5] sm:$0xff]
      %vm568 = vcmask 64512
      %v570 = vsel %vm568, %v567, 0
      %572 = vmatpush.msra.mxu0 0.0
      %573 = vmatpush.msra.mxu0 0.0
      %574 = vmatpush.msra.mxu0 0.0
      %575 = vmatpush.msra.mxu0 0.0
      %576 = vmatpush.msra.mxu0 0.0
      %577 = vmatpush.msra.mxu0 0.0
      %578 = vmatpush.msra.mxu0 0.0
      %579 = vmatpush.msra.mxu0 0.0
      %580 = vmatpush.msra.mxu0 0.0
      %581 = vmatpush.msra.mxu0 0.0
      %582 = vmatpush.msra.mxu0 0.0
      %583 = vmatpush.msra.mxu0 0.0
      %584 = vmatpush.msra.mxu0 0.0
      %585 = vmatpush.msra.mxu0 0.0
      %586 = vmatpush.msra.mxu0 0.0
      %587 = vmatpush.msra.mxu0 %v560
      %588 = vmatmul.f32.gmra.mxu0 %v570
      %v589 = vpop.f32.mrf.mxu0
      %v590 = vadd.f32 0.0, %v589
      %591 = vdwg.mxu0
      %592 = vmatpush.msra.mxu0 0.0
      %593 = vmatpush.msra.mxu0 0.0
      %594 = vmatpush.msra.mxu0 0.0
      %595 = vmatpush.msra.mxu0 0.0
      %596 = vmatpush.msra.mxu0 0.0
      %597 = vmatpush.msra.mxu0 0.0
      %598 = vmatpush.msra.mxu0 0.0
      %599 = vmatpush.msra.mxu0 0.0
      %600 = vmatpush.msra.mxu0 0.0
      %601 = vmatpush.msra.mxu0 0.0
      %602 = vmatpush.msra.mxu0 0.0
      %603 = vmatpush.msra.mxu0 0.0
      %604 = vmatpush.msra.mxu0 0.0
      %605 = vmatpush.msra.mxu0 0.0
      %606 = vmatpush.msra.mxu0 0.0
      %607 = vmatpush.msra.mxu0 %v561
      %608 = vmatmul.f32.gmra.mxu0 %v570
      %v609 = vpop.f32.mrf.mxu0
      %v610 = vadd.f32 0.0, %v609
      %611 = vdwg.mxu0
      %613 = vst [vmem:[#allocation1] ss:$2 sm:$0xff] %v559
      %v614 = vld.sshfl [vmem:[#allocation1] sm:$0xff pattern:$0x75316420]
      %v615 = vld.sshfl [vmem:[#allocation1 + $0x8] sm:$0xff pattern:$0x75316420]
      %vm616 = vcmask 31744
      %v618 = vsel %vm616, %v566, 0
      %vm620 = vcmask 1043456
      %v621 = vsel %vm620, %v614, 0
      %v623 = vsel %vm620, %v615, 0
      %625 = vmatpush.msra.mxu0 0.0
      %626 = vmatpush.msra.mxu0 0.0
      %627 = vmatpush.msra.mxu0 0.0
      %628 = vmatpush.msra.mxu0 0.0
      %629 = vmatpush.msra.mxu0 0.0
      %630 = vmatpush.msra.mxu0 0.0
      %631 = vmatpush.msra.mxu0 0.0
      %632 = vmatpush.msra.mxu0 0.0
      %633 = vmatpush.msra.mxu0 0.0
      %634 = vmatpush.msra.mxu0 0.0
      %635 = vmatpush.msra.mxu0 0.0
      %636 = vmatpush.msra.mxu0 0.0
      %637 = vmatpush.msra.mxu0 0.0
      %638 = vmatpush.msra.mxu0 0.0
      %639 = vmatpush.msra.mxu0 0.0
      %640 = vmatpush.msra.mxu0 %v621
      %641 = vmatmul.f32.gmra.mxu0 %v618
      %v642 = vpop.f32.mrf.mxu0
      %v643 = vadd.f32 %v590, %v642
      %644 = vdwg.mxu0
      %645 = vmatpush.msra.mxu0 0.0
      %646 = vmatpush.msra.mxu0 0.0
      %647 = vmatpush.msra.mxu0 0.0
      %648 = vmatpush.msra.mxu0 0.0
      %649 = vmatpush.msra.mxu0 0.0
      %650 = vmatpush.msra.mxu0 0.0
      %651 = vmatpush.msra.mxu0 0.0
      %652 = vmatpush.msra.mxu0 0.0
      %653 = vmatpush.msra.mxu0 0.0
      %654 = vmatpush.msra.mxu0 0.0
      %655 = vmatpush.msra.mxu0 0.0
      %656 = vmatpush.msra.mxu0 0.0
      %657 = vmatpush.msra.mxu0 0.0
      %658 = vmatpush.msra.mxu0 0.0
      %659 = vmatpush.msra.mxu0 0.0
      %660 = vmatpush.msra.mxu0 %v623
      %661 = vmatmul.f32.gmra.mxu0 %v618
      %v662 = vpop.f32.mrf.mxu0
      %v663 = vadd.f32 %v610, %v662
      %664 = vdwg.mxu0
      %v665 = vld [vmem:[%s6] sm:$0xff]
      %vm666 = vcmask 130048
      %v668 = vsel %vm666, %v665, 0
      %670 = vmatpush.msra.mxu0 0.0
      %671 = vmatpush.msra.mxu0 0.0
      %672 = vmatpush.msra.mxu0 0.0
      %673 = vmatpush.msra.mxu0 0.0
      %674 = vmatpush.msra.mxu0 0.0
      %675 = vmatpush.msra.mxu0 0.0
      %676 = vmatpush.msra.mxu0 0.0
      %677 = vmatpush.msra.mxu0 0.0
      %678 = vmatpush.msra.mxu0 0.0
      %679 = vmatpush.msra.mxu0 0.0
      %680 = vmatpush.msra.mxu0 0.0
      %681 = vmatpush.msra.mxu0 0.0
      %682 = vmatpush.msra.mxu0 0.0
      %683 = vmatpush.msra.mxu0 0.0
      %684 = vmatpush.msra.mxu0 %v564
      %685 = vmatpush.msra.mxu0 %v562
      %686 = vmatmul.f32.gmra.mxu0 %v668
      %v687 = vpop.f32.mrf.mxu0
      %v688 = vadd.f32 0.0, %v687
      %689 = vdwg.mxu0
      %690 = vmatpush.msra.mxu0 0.0
      %691 = vmatpush.msra.mxu0 0.0
      %692 = vmatpush.msra.mxu0 0.0
      %693 = vmatpush.msra.mxu0 0.0
      %694 = vmatpush.msra.mxu0 0.0
      %695 = vmatpush.msra.mxu0 0.0
      %696 = vmatpush.msra.mxu0 0.0
      %697 = vmatpush.msra.mxu0 0.0
      %698 = vmatpush.msra.mxu0 0.0
      %699 = vmatpush.msra.mxu0 0.0
      %700 = vmatpush.msra.mxu0 0.0
      %701 = vmatpush.msra.mxu0 0.0
      %702 = vmatpush.msra.mxu0 0.0
      %703 = vmatpush.msra.mxu0 0.0
      %704 = vmatpush.msra.mxu0 %v565
      %705 = vmatpush.msra.mxu0 %v563
      %706 = vmatmul.f32.gmra.mxu0 %v668
      %v707 = vpop.f32.mrf.mxu0
      %v708 = vadd.f32 0.0, %v707
      %709 = vdwg.mxu0
      %v710 = vadd.f32 %v643, %v688
      %v711 = vadd.f32 %v663, %v708
      %v712 = vld [vmem:[%s7] sm:$0xff]
      %714 = vset.pattern.permute.xlu0 0
      %715 = vperm.xlu0 %714, %v712
      %v716 = vpop.permute.xlu0 %715
      %v718 = vadd.f32 %v710, %v716
      %v719 = vadd.f32 %v711, %v716
      %vm720 = vcmp.ge.f32.partialorder %v718, 0.0
      %vm721 = vcmp.ge.f32.partialorder %v719, 0.0
      %v722 = vmul.f32 %v718, 0.01
      %v723 = vmul.f32 %v719, 0.01
      %v724 = vsel %vm720, %v718, %v722
      %v725 = vsel %vm721, %v719, %v723
      %v726 = vld [vmem:[%s8] sm:$0xff]
      %728 = vset.pattern.permute.xlu0 0
      %729 = vperm.xlu0 %728, %v726
      %v730 = vpop.permute.xlu0 %729
      %v732 = vmul.f32 %v724, %v730
      %v733 = vmul.f32 %v725, %v730
      %v734 = vrot.slane %v732, 4
      %v735 = vadd.f32 %v732, %v734
      %v736 = vrot.slane %v735, 2
      %v737 = vadd.f32 %v735, %v736
      %v738 = vrot.slane %v737, 1
      %v739 = vadd.f32 %v737, %v738
      %v740 = vrot.slane %v733, 4
      %v741 = vadd.f32 %v733, %v740
      %v742 = vrot.slane %v741, 2
      %v743 = vadd.f32 %v741, %v742
      %v744 = vrot.slane %v743, 1
      %v745 = vadd.f32 %v743, %v744
      %v746 = vld [vmem:[#allocation2] sm:$0x1]
      %748 = vset.pattern.permute.xlu0 0
      %749 = vperm.xlu0 %748, %v746
      %v750 = vpop.permute.xlu0 %749
      %v752 = vperm.slane %v750, 0
      %v753 = vadd.f32 %v739, %v752
      %v754 = vadd.f32 %v745, %v752
      %vm755 = vcmp.ge.f32.partialorder %v753, 0.0
      %vm756 = vcmp.ge.f32.partialorder %v754, 0.0
      %v757 = vmul.f32 %v753, 0.01
      %v758 = vmul.f32 %v754, 0.01
      %v759 = vsel %vm755, %v753, %v757
      %v760 = vsel %vm756, %v754, %v758
      %v763 = vrot.slane %v760, 7
      %vm764 = vcmask 1040384
      %v765 = vsel %vm764, %v759, %v763
      %v767 = vlaneseq
      %vm768 = vcmp.ge.s32.totalorder %v767, 0
      %vm769 = vcmp.lt.s32.totalorder %v767, 256
      %vm770 = vmand %vm768, %vm769
      %771 = vst.msk [vmem:[%s556] sm:$0x3] %vm770, %v765
      %v772 = vrot.slane %v760, 4
      %v773 = vsel %vm620, %v759, %v772
      %v775 = vmul.f32 %v558, %v773
      %776 = vst [vmem:[%s547] sm:$0xff] %v775
      %s777 = smul.u32 2, %s29
      %p778 = scmp.lt.s32.totalorder %s30, 1
      %s779 = scalar_select %p778, %s30, 1
      %p780 = scmp.lt.s32.totalorder %s777, 1
      %s781 = scalar_select %p780, %s777, 1
      %s782 = smul.addr %s779, 2
      %s783 = sadd.s32 %s781, %s782
      %s784 = smul.addr %s783, 4
      %s785 = scalar_lea.vmem %s10, %s784
      %s786 = smul.u32 2, %s29
      %p787 = scmp.lt.s32.totalorder %s30, 1
      %s788 = scalar_select %p787, %s30, 1
      %p789 = scmp.lt.s32.totalorder %s786, 1
      %s790 = scalar_select %p789, %s786, 1
      %s791 = smul.addr %s788, 2
      %s792 = sadd.s32 %s790, %s791
      %s793 = scalar_lea.vmem %s11, %s792
      // Predicated region
      $region61: #{attention_block_forward.1} parent=59 // pred_check
        %p794 = pneg %p295
      $region62: #{attention_block_forward.1} parent=59 // pred_check_branch
        %796 = sbr.rel (%p794) target = $region64
      $region63: #{attention_block_forward.1} parent=59 // pred_region
        %s797 = smul.u32 2, %s29
      $region64: #{attention_block_forward.1} parent=59 // pred_fallthru
        _
      // Predicated region
      $region65: #{attention_block_forward.1} parent=59 // pred_check
        %p798 = pneg %p323
      $region66: #{attention_block_forward.1} parent=59 // pred_check_branch
        %800 = sbr.rel (%p798) target = $region68
      $region67: #{attention_block_forward.1} parent=59 // pred_region
        %s801 = smul.u32 2, %s29
      $region68: #{attention_block_forward.1} parent=59 // pred_fallthru
        _
    $region60: #{attention_block_forward.1} parent=5 // pred_fallthru
      _
    %p802 = scmp.le.s32.totalorder 2, %s20
    // Predicated region
    $region69: #{attention_block_forward.1} parent=5 // pred_check
      %p803 = pneg %p802
    $region70: #{attention_block_forward.1} parent=5 // pred_check_branch
      %805 = sbr.rel (%p803) target = $region72
    $region71: #{attention_block_forward.1} parent=5 // pred_region
      %s806 = ssub.s32 %s20, 2
      // Predicated region
      $region73: #{attention_block_forward.1} parent=71 // pred_check
        %p807 = pneg %p301
      $region74: #{attention_block_forward.1} parent=71 // pred_check_branch
        %809 = sbr.rel (%p807) target = $region76
      $region75: #{attention_block_forward.1} parent=71 // pred_region
        %s810 = smul.u32 2, %s31
        %p811 = scmp.lt.s32.totalorder %s32, 1
        %s812 = scalar_select %p811, %s32, 1
        %p813 = scmp.lt.s32.totalorder %s810, 1
        %s814 = scalar_select %p813, %s810, 1
        %s815 = smul.addr %s812, 2
        %s816 = sadd.s32 %s814, %s815
        %s817 = smul.addr %s816, 4
        %s818 = scalar_lea.vmem %s10, %s817
      $region76: #{attention_block_forward.1} parent=71 // pred_fallthru
        _
      // Predicated region
      $region77: #{attention_block_forward.1} parent=71 // pred_check
        %p819 = pneg %p329
      $region78: #{attention_block_forward.1} parent=71 // pred_check_branch
        %821 = sbr.rel (%p819) target = $region80
      $region79: #{attention_block_forward.1} parent=71 // pred_region
        %s822 = smul.u32 2, %s31
        %p823 = scmp.lt.s32.totalorder %s32, 1
        %s824 = scalar_select %p823, %s32, 1
        %p825 = scmp.lt.s32.totalorder %s822, 1
        %s826 = scalar_select %p825, %s822, 1
        %s827 = smul.addr %s824, 2
        %s828 = sadd.s32 %s826, %s827
        %s829 = scalar_lea.vmem %s11, %s828
      $region80: #{attention_block_forward.1} parent=71 // pred_fallthru
        _
    $region72: #{attention_block_forward.1} parent=5 // pred_fallthru
      _
  $region6: #{attention_block_forward.1} parent=0 // loop_footer
    %s24 = sadd.s32 1, %s20
  $region7: #{attention_block_forward.1} parent=0 // loop_footer_branch
    %19 = sbr.rel target = $region3
  $region8: #{attention_block_forward.1} parent=0 // loop_exit
    _

</llo_original>
